<compile_context>
chip_gen: v7x
topology: tpu7x:2x2x1
jax: 0.10.0
libtpu: 0.0.40
codegen_flags: <defaults>
</compile_context>

<pallas_src>
import functools
import math

import jax
import jax.numpy as jnp
from jax.experimental import pallas as pl
from jax.experimental.pallas import tpu as pltpu

# -------- model sizes (synthetic, small) --------
B = 2            # batch
N_SLAVES = 4     # number of slaves
D_IN = 16        # input_shape (per-slave feature dim)
H = 32           # args.master_hidden_dim
A = 32           # args.attention_dim
S = 24           # args.state_shape


def _comm_master_kernel(scale, n_slaves, n_batch,
                        state_ref, h_in_ref, c_in_ref, hs_ref,
                        w_enc_ref, b_enc_ref,
                        w_q_ref, w_kv_ref, b_v_ref,
                        w_dec_s_ref, w_dec_a_ref, b_dec_ref,
                        w_ih_ref, w_hh_ref, b_gates_ref,
                        hc_out_ref):
    state = state_ref[...]      # (B, S)
    h_in = h_in_ref[...]        # (B, H)
    c_in = c_in_ref[...]        # (B, H)
    hs = hs_ref[...]            # (N*B, D)  -- slave-major rows: row n*B + b == h_slave[b, n]

    # slave encoding for all (slave, batch) rows at once: relu(hs @ W_enc + b_enc)
    enc = jnp.maximum(
        jnp.dot(hs, w_enc_ref[...], preferred_element_type=jnp.float32) + b_enc_ref[...],
        0.0)                                                                   # (N*B, H)

    # master query, and fused k|v projection (single lane-dense matmul)
    q = jnp.dot(h_in, w_q_ref[...], preferred_element_type=jnp.float32)        # (B, A)
    kv = jnp.dot(enc, w_kv_ref[...], preferred_element_type=jnp.float32)       # (N*B, 2A)

    # attention over slaves: scores via broadcast-multiply + lane reduce.
    # n_slaves is tiny and static, so the loop is fully unrolled at trace time.
    scores = []
    values = []
    for n in range(n_slaves):
        row = kv[n * n_batch:(n + 1) * n_batch, :]                              # (B, 2A)
        k_n = row[:, :A]                                                        # (B, A)
        v_n = jnp.maximum(row[:, A:] + b_v_ref[...], 0.0)                       # (B, A)
        scores.append(jnp.sum(q * k_n, axis=-1, keepdims=True) * scale)         # (B, 1)
        values.append(v_n)

    # numerically-stable softmax over the n_slaves scores (per batch row)
    m = scores[0]
    for n in range(1, n_slaves):
        m = jnp.maximum(m, scores[n])
    exps = [jnp.exp(s - m) for s in scores]
    denom = exps[0]
    for n in range(1, n_slaves):
        denom = denom + exps[n]
    inv = 1.0 / denom                                                           # (B, 1)

    # attention-weighted sum of slave values
    i_m = (exps[0] * inv) * values[0]
    for n in range(1, n_slaves):
        i_m = i_m + (exps[n] * inv) * values[n]                                 # (B, A)

    # decoding: relu(concat([state, i_m]) @ W_dec + b_dec), with W_dec split into its
    # state / attention rows so no in-kernel concatenation is needed.
    dec = jnp.maximum(
        jnp.dot(state, w_dec_s_ref[...], preferred_element_type=jnp.float32)
        + jnp.dot(i_m, w_dec_a_ref[...], preferred_element_type=jnp.float32)
        + b_dec_ref[...], 0.0)                                                  # (B, H)

    # LSTMCell, PyTorch gate order (i, f, g, o) stacked along the lane axis: one
    # lane-dense (B, 4H) = (B, 128) result, then static lane slices per gate.
    gates = (jnp.dot(dec, w_ih_ref[...], preferred_element_type=jnp.float32)
             + jnp.dot(h_in, w_hh_ref[...], preferred_element_type=jnp.float32)
             + b_gates_ref[...])                                                # (B, 4H)

    i_g = jax.nn.sigmoid(gates[:, 0 * H:1 * H])
    f_g = jax.nn.sigmoid(gates[:, 1 * H:2 * H])
    g_g = jnp.tanh(gates[:, 2 * H:3 * H])
    o_g = jax.nn.sigmoid(gates[:, 3 * H:4 * H])

    c_new = f_g * c_in + i_g * g_g
    h_new = o_g * jnp.tanh(c_new)

    # merged output: [h | c] along the lane axis
    hc_out_ref[:, :H] = h_new
    hc_out_ref[:, H:] = c_new


def comm_master_forward(state, hidden_state, cell_state, h_slave, params):
    """state (B,1,S), hidden/cell (B,1,H), h_slave (B,N,D) -> (h_out, c_out) each (B,1,H)."""
    b = state.shape[0]
    n = h_slave.shape[1]
    d = h_slave.shape[2]
    scale = 1.0 / math.sqrt(A)

    # trace-time glue (all tiny): flatten batch dims, slave-major slave rows,
    # fused k|v weight, split decoder weight, combined LSTM bias.
    state2 = state.reshape(b, S)
    h_in2 = hidden_state.reshape(b, H)
    c_in2 = cell_state.reshape(b, H)
    hs_t = h_slave.transpose(1, 0, 2).reshape(n * b, d)                # (N*B, D)

    w_kv = jnp.concatenate([params["w_k"], params["w_v"]], axis=1)     # (H, 2A)
    w_dec_s = params["w_dec"][:S]                                      # (S, H)
    w_dec_a = params["w_dec"][S:]                                      # (A, H)
    b_gates = (params["b_ih"] + params["b_hh"]).reshape(1, 4 * H)      # (1, 4H)

    full = lambda shp: pl.BlockSpec(shp, lambda i: (0, 0))

    kernel = functools.partial(_comm_master_kernel, scale, n, b)
    hc = pl.pallas_call(
        kernel,
        grid=(1,),
        in_specs=[
            full((b, S)),            # state
            full((b, H)),            # h_in
            full((b, H)),            # c_in
            full((n * b, d)),        # h_slave (slave-major)
            full((d, H)),            # w_enc
            full((1, H)),            # b_enc
            full((H, A)),            # w_q
            full((H, 2 * A)),        # w_kv (fused k|v)
            full((1, A)),            # b_v
            full((S, H)),            # w_dec (state rows)
            full((A, H)),            # w_dec (attention rows)
            full((1, H)),            # b_dec
            full((H, 4 * H)),        # w_ih (i|f|g|o along lanes)
            full((H, 4 * H)),        # w_hh
            full((1, 4 * H)),        # b_ih + b_hh
        ],
        out_specs=full((b, 2 * H)),
        out_shape=jax.ShapeDtypeStruct((b, 2 * H), jnp.float32),
        compiler_params=pltpu.CompilerParams(dimension_semantics=("arbitrary",)),
    )(state2, h_in2, c_in2, hs_t,
      params["w_enc"], params["b_enc"],
      params["w_q"], w_kv, params["b_v"],
      w_dec_s, w_dec_a, params["b_dec"],
      params["w_ih"], params["w_hh"], b_gates)

    h_out = hc[:, :H].reshape(b, 1, H)
    c_out = hc[:, H:].reshape(b, 1, H)
    return h_out, c_out


def reference_forward(state3, hidden3, cell3, h_slave, p):
    """Plain-JAX replica of CommMaster.forward for verification."""
    b, n, d = h_slave.shape
    state = state3.reshape(-1, S)
    h_in = hidden3.reshape(-1, H)
    c_in = cell3.reshape(-1, H)
    enc = jax.nn.relu(h_slave.reshape(b * n, d) @ p["w_enc"] + p["b_enc"])
    q = h_in @ p["w_q"]
    k = (enc @ p["w_k"]).reshape(b, n, A)
    v = jax.nn.relu(enc @ p["w_v"] + p["b_v"]).reshape(b, n, A)
    score = jnp.einsum("ba,bna->bn", q, k) * (1.0 / math.sqrt(A))
    w = jax.nn.softmax(score, axis=-1)
    i_m = jnp.einsum("bn,bna->ba", w, v)
    inp = jnp.concatenate([state, i_m], axis=-1)
    dec = jax.nn.relu(inp @ p["w_dec"] + p["b_dec"])
    gates = dec @ p["w_ih"] + p["b_ih"] + h_in @ p["w_hh"] + p["b_hh"]
    i_g, f_g, g_g, o_g = jnp.split(gates, 4, axis=-1)
    c_out = jax.nn.sigmoid(f_g) * c_in + jax.nn.sigmoid(i_g) * jnp.tanh(g_g)
    h_out = jax.nn.sigmoid(o_g) * jnp.tanh(c_out)
    return h_out.reshape(-1, 1, H), c_out.reshape(-1, 1, H)


def init_params(key):
    ks = jax.random.split(key, 12)
    rnd = lambda k, shp, s=0.1: (s * jax.random.normal(k, shp, dtype=jnp.float32))
    return {
        "w_enc": rnd(ks[0], (D_IN, H)),
        "b_enc": rnd(ks[1], (1, H)),
        "w_q":   rnd(ks[2], (H, A)),
        "w_k":   rnd(ks[3], (H, A)),
        "w_v":   rnd(ks[4], (H, A)),
        "b_v":   rnd(ks[5], (1, A)),
        "w_dec": rnd(ks[6], (S + A, H)),
        "b_dec": rnd(ks[7], (1, H)),
        "w_ih":  rnd(ks[8], (H, 4 * H)),   # gate order i|f|g|o along columns
        "w_hh":  rnd(ks[9], (H, 4 * H)),
        "b_ih":  rnd(ks[10], (4 * H,)),
        "b_hh":  rnd(ks[11], (4 * H,)),
    }


if __name__ == "__main__":
    key = jax.random.PRNGKey(0)
    k_par, k_st, k_h, k_c, k_sl = jax.random.split(key, 5)
    params = init_params(k_par)

    state = jax.random.normal(k_st, (B, 1, S), dtype=jnp.float32)
    hidden = jax.random.normal(k_h, (B, 1, H), dtype=jnp.float32)
    cell = jax.random.normal(k_c, (B, 1, H), dtype=jnp.float32)
    h_slave = jax.random.normal(k_sl, (B, N_SLAVES, D_IN), dtype=jnp.float32)

    h_out, c_out = comm_master_forward(state, hidden, cell, h_slave, params)
    jax.block_until_ready((h_out, c_out))

    h_ref, c_ref = reference_forward(state, hidden, cell, h_slave, params)
    assert h_out.shape == (B, 1, H) and c_out.shape == (B, 1, H)
    assert jnp.allclose(h_out, h_ref, atol=1e-4, rtol=1e-4), "h_out mismatch"
    assert jnp.allclose(c_out, c_ref, atol=1e-4, rtol=1e-4), "c_out mismatch"

    print("KERNEL_OK")
</pallas_src>

<mosaic_0001>
module attributes {stable_mosaic.version = 11 : i64} {
  func.func @_comm_master_kernel(%arg0: i32, %arg1: memref<2x24xf32, #tpu.memory_space<vmem>>, %arg2: memref<2x32xf32, #tpu.memory_space<vmem>>, %arg3: memref<2x32xf32, #tpu.memory_space<vmem>>, %arg4: memref<8x16xf32, #tpu.memory_space<vmem>>, %arg5: memref<16x32xf32, #tpu.memory_space<vmem>>, %arg6: memref<1x32xf32, #tpu.memory_space<vmem>>, %arg7: memref<32x32xf32, #tpu.memory_space<vmem>>, %arg8: memref<32x64xf32, #tpu.memory_space<vmem>>, %arg9: memref<1x32xf32, #tpu.memory_space<vmem>>, %arg10: memref<24x32xf32, #tpu.memory_space<vmem>>, %arg11: memref<32x32xf32, #tpu.memory_space<vmem>>, %arg12: memref<1x32xf32, #tpu.memory_space<vmem>>, %arg13: memref<32x128xf32, #tpu.memory_space<vmem>>, %arg14: memref<32x128xf32, #tpu.memory_space<vmem>>, %arg15: memref<1x128xf32, #tpu.memory_space<vmem>>, %arg16: memref<2x64xf32, #tpu.memory_space<vmem>>) attributes {dimension_semantics = [#tpu.dimension_semantics<arbitrary>], iteration_bounds = array<i64: 1>, scalar_prefetch = 0 : i64, scratch_operands = 0 : i64, tpu.core_type = #tpu.core_type<tc>, window_params = [{pipeline_mode = #tpu.pipeline_mode<synchronous>, transform_indices = @transform_0, window_bounds = array<i64: 2, 24>}, {pipeline_mode = #tpu.pipeline_mode<synchronous>, transform_indices = @transform_1, window_bounds = array<i64: 2, 32>}, {pipeline_mode = #tpu.pipeline_mode<synchronous>, transform_indices = @transform_2, window_bounds = array<i64: 2, 32>}, {pipeline_mode = #tpu.pipeline_mode<synchronous>, transform_indices = @transform_3, window_bounds = array<i64: 8, 16>}, {pipeline_mode = #tpu.pipeline_mode<synchronous>, transform_indices = @transform_4, window_bounds = array<i64: 16, 32>}, {pipeline_mode = #tpu.pipeline_mode<synchronous>, transform_indices = @transform_5, window_bounds = array<i64: 1, 32>}, {pipeline_mode = #tpu.pipeline_mode<synchronous>, transform_indices = @transform_6, window_bounds = array<i64: 32, 32>}, {pipeline_mode = #tpu.pipeline_mode<synchronous>, transform_indices = @transform_7, window_bounds = array<i64: 32, 64>}, {pipeline_mode = #tpu.pipeline_mode<synchronous>, transform_indices = @transform_8, window_bounds = array<i64: 1, 32>}, {pipeline_mode = #tpu.pipeline_mode<synchronous>, transform_indices = @transform_9, window_bounds = array<i64: 24, 32>}, {pipeline_mode = #tpu.pipeline_mode<synchronous>, transform_indices = @transform_10, window_bounds = array<i64: 32, 32>}, {pipeline_mode = #tpu.pipeline_mode<synchronous>, transform_indices = @transform_11, window_bounds = array<i64: 1, 32>}, {pipeline_mode = #tpu.pipeline_mode<synchronous>, transform_indices = @transform_12, window_bounds = array<i64: 32, 128>}, {pipeline_mode = #tpu.pipeline_mode<synchronous>, transform_indices = @transform_13, window_bounds = array<i64: 32, 128>}, {pipeline_mode = #tpu.pipeline_mode<synchronous>, transform_indices = @transform_14, window_bounds = array<i64: 1, 128>}, {pipeline_mode = #tpu.pipeline_mode<synchronous>, transform_indices = @transform_15, window_bounds = array<i64: 2, 64>}]} {
    %c0 = arith.constant 0 : index
    %c0_0 = arith.constant 0 : index
    %0 = vector.load %arg1[%c0, %c0_0] : memref<2x24xf32, #tpu.memory_space<vmem>>, vector<2x24xf32>
    %c0_1 = arith.constant 0 : index
    %c0_2 = arith.constant 0 : index
    %1 = vector.load %arg2[%c0_1, %c0_2] : memref<2x32xf32, #tpu.memory_space<vmem>>, vector<2x32xf32>
    %c0_3 = arith.constant 0 : index
    %c0_4 = arith.constant 0 : index
    %2 = vector.load %arg3[%c0_3, %c0_4] : memref<2x32xf32, #tpu.memory_space<vmem>>, vector<2x32xf32>
    %c0_5 = arith.constant 0 : index
    %c0_6 = arith.constant 0 : index
    %3 = vector.load %arg4[%c0_5, %c0_6] : memref<8x16xf32, #tpu.memory_space<vmem>>, vector<8x16xf32>
    %c0_7 = arith.constant 0 : index
    %c0_8 = arith.constant 0 : index
    %4 = vector.load %arg5[%c0_7, %c0_8] : memref<16x32xf32, #tpu.memory_space<vmem>>, vector<16x32xf32>
    %cst = arith.constant dense<0.000000e+00> : vector<8x32xf32>
    %5 = tpu.matmul %3, %4, %cst {dimension_numbers = #tpu.dot_dimension_numbers<[1], [0], [0], [1], [0, 0, 1, 1], [], []>} : vector<8x16xf32>, vector<16x32xf32>, vector<8x32xf32> -> vector<8x32xf32>
    %c0_9 = arith.constant 0 : index
    %c0_10 = arith.constant 0 : index
    %6 = vector.load %arg6[%c0_9, %c0_10] : memref<1x32xf32, #tpu.memory_space<vmem>>, vector<1x32xf32>
    %7 = vector.broadcast %6 : vector<1x32xf32> to vector<8x32xf32>
    %8 = arith.addf %5, %7 : vector<8x32xf32>
    %cst_11 = arith.constant 0.000000e+00 : f32
    %9 = vector.broadcast %cst_11 : f32 to vector<8x32xf32>
    %10 = arith.maximumf %8, %9 : vector<8x32xf32>
    %c0_12 = arith.constant 0 : index
    %c0_13 = arith.constant 0 : index
    %11 = vector.load %arg7[%c0_12, %c0_13] : memref<32x32xf32, #tpu.memory_space<vmem>>, vector<32x32xf32>
    %cst_14 = arith.constant dense<0.000000e+00> : vector<2x32xf32>
    %12 = tpu.matmul %1, %11, %cst_14 {dimension_numbers = #tpu.dot_dimension_numbers<[1], [0], [0], [1], [0, 0, 1, 1], [], []>} : vector<2x32xf32>, vector<32x32xf32>, vector<2x32xf32> -> vector<2x32xf32>
    %c0_15 = arith.constant 0 : index
    %c0_16 = arith.constant 0 : index
    %13 = vector.load %arg8[%c0_15, %c0_16] : memref<32x64xf32, #tpu.memory_space<vmem>>, vector<32x64xf32>
    %cst_17 = arith.constant dense<0.000000e+00> : vector<8x64xf32>
    %14 = tpu.matmul %10, %13, %cst_17 {dimension_numbers = #tpu.dot_dimension_numbers<[1], [0], [0], [1], [0, 0, 1, 1], [], []>} : vector<8x32xf32>, vector<32x64xf32>, vector<8x64xf32> -> vector<8x64xf32>
    %15 = vector.extract_strided_slice %14 {offsets = [0, 0], sizes = [2, 64], strides = [1, 1]} : vector<8x64xf32> to vector<2x64xf32>
    %16 = vector.extract_strided_slice %15 {offsets = [0, 0], sizes = [2, 32], strides = [1, 1]} : vector<2x64xf32> to vector<2x32xf32>
    %17 = vector.extract_strided_slice %15 {offsets = [0, 32], sizes = [2, 32], strides = [1, 1]} : vector<2x64xf32> to vector<2x32xf32>
    %c0_18 = arith.constant 0 : index
    %c0_19 = arith.constant 0 : index
    %18 = vector.load %arg9[%c0_18, %c0_19] : memref<1x32xf32, #tpu.memory_space<vmem>>, vector<1x32xf32>
    %19 = vector.broadcast %18 : vector<1x32xf32> to vector<2x32xf32>
    %20 = arith.addf %17, %19 : vector<2x32xf32>
    %cst_20 = arith.constant 0.000000e+00 : f32
    %21 = vector.broadcast %cst_20 : f32 to vector<2x32xf32>
    %22 = arith.maximumf %20, %21 : vector<2x32xf32>
    %23 = arith.mulf %12, %16 : vector<2x32xf32>
    %cst_21 = arith.constant dense<0.000000e+00> : vector<2xf32>
    %24 = vector.multi_reduction <add>, %23, %cst_21 [1] : vector<2x32xf32> to vector<2xf32>
    %25 = vector.shape_cast %24 : vector<2xf32> to vector<2x1xf32>
    %cst_22 = arith.constant 0.176776692 : f32
    %26 = vector.broadcast %cst_22 : f32 to vector<2x1xf32>
    %27 = arith.mulf %25, %26 : vector<2x1xf32>
    %28 = vector.extract_strided_slice %14 {offsets = [2, 0], sizes = [2, 64], strides = [1, 1]} : vector<8x64xf32> to vector<2x64xf32>
    %29 = vector.extract_strided_slice %28 {offsets = [0, 0], sizes = [2, 32], strides = [1, 1]} : vector<2x64xf32> to vector<2x32xf32>
    %30 = vector.extract_strided_slice %28 {offsets = [0, 32], sizes = [2, 32], strides = [1, 1]} : vector<2x64xf32> to vector<2x32xf32>
    %c0_23 = arith.constant 0 : index
    %c0_24 = arith.constant 0 : index
    %31 = vector.load %arg9[%c0_23, %c0_24] : memref<1x32xf32, #tpu.memory_space<vmem>>, vector<1x32xf32>
    %32 = vector.broadcast %31 : vector<1x32xf32> to vector<2x32xf32>
    %33 = arith.addf %30, %32 : vector<2x32xf32>
    %cst_25 = arith.constant 0.000000e+00 : f32
    %34 = vector.broadcast %cst_25 : f32 to vector<2x32xf32>
    %35 = arith.maximumf %33, %34 : vector<2x32xf32>
    %36 = arith.mulf %12, %29 : vector<2x32xf32>
    %cst_26 = arith.constant dense<0.000000e+00> : vector<2xf32>
    %37 = vector.multi_reduction <add>, %36, %cst_26 [1] : vector<2x32xf32> to vector<2xf32>
    %38 = vector.shape_cast %37 : vector<2xf32> to vector<2x1xf32>
    %cst_27 = arith.constant 0.176776692 : f32
    %39 = vector.broadcast %cst_27 : f32 to vector<2x1xf32>
    %40 = arith.mulf %38, %39 : vector<2x1xf32>
    %41 = vector.extract_strided_slice %14 {offsets = [4, 0], sizes = [2, 64], strides = [1, 1]} : vector<8x64xf32> to vector<2x64xf32>
    %42 = vector.extract_strided_slice %41 {offsets = [0, 0], sizes = [2, 32], strides = [1, 1]} : vector<2x64xf32> to vector<2x32xf32>
    %43 = vector.extract_strided_slice %41 {offsets = [0, 32], sizes = [2, 32], strides = [1, 1]} : vector<2x64xf32> to vector<2x32xf32>
    %c0_28 = arith.constant 0 : index
    %c0_29 = arith.constant 0 : index
    %44 = vector.load %arg9[%c0_28, %c0_29] : memref<1x32xf32, #tpu.memory_space<vmem>>, vector<1x32xf32>
    %45 = vector.broadcast %44 : vector<1x32xf32> to vector<2x32xf32>
    %46 = arith.addf %43, %45 : vector<2x32xf32>
    %cst_30 = arith.constant 0.000000e+00 : f32
    %47 = vector.broadcast %cst_30 : f32 to vector<2x32xf32>
    %48 = arith.maximumf %46, %47 : vector<2x32xf32>
    %49 = arith.mulf %12, %42 : vector<2x32xf32>
    %cst_31 = arith.constant dense<0.000000e+00> : vector<2xf32>
    %50 = vector.multi_reduction <add>, %49, %cst_31 [1] : vector<2x32xf32> to vector<2xf32>
    %51 = vector.shape_cast %50 : vector<2xf32> to vector<2x1xf32>
    %cst_32 = arith.constant 0.176776692 : f32
    %52 = vector.broadcast %cst_32 : f32 to vector<2x1xf32>
    %53 = arith.mulf %51, %52 : vector<2x1xf32>
    %54 = vector.extract_strided_slice %14 {offsets = [6, 0], sizes = [2, 64], strides = [1, 1]} : vector<8x64xf32> to vector<2x64xf32>
    %55 = vector.extract_strided_slice %54 {offsets = [0, 0], sizes = [2, 32], strides = [1, 1]} : vector<2x64xf32> to vector<2x32xf32>
    %56 = vector.extract_strided_slice %54 {offsets = [0, 32], sizes = [2, 32], strides = [1, 1]} : vector<2x64xf32> to vector<2x32xf32>
    %c0_33 = arith.constant 0 : index
    %c0_34 = arith.constant 0 : index
    %57 = vector.load %arg9[%c0_33, %c0_34] : memref<1x32xf32, #tpu.memory_space<vmem>>, vector<1x32xf32>
    %58 = vector.broadcast %57 : vector<1x32xf32> to vector<2x32xf32>
    %59 = arith.addf %56, %58 : vector<2x32xf32>
    %cst_35 = arith.constant 0.000000e+00 : f32
    %60 = vector.broadcast %cst_35 : f32 to vector<2x32xf32>
    %61 = arith.maximumf %59, %60 : vector<2x32xf32>
    %62 = arith.mulf %12, %55 : vector<2x32xf32>
    %cst_36 = arith.constant dense<0.000000e+00> : vector<2xf32>
    %63 = vector.multi_reduction <add>, %62, %cst_36 [1] : vector<2x32xf32> to vector<2xf32>
    %64 = vector.shape_cast %63 : vector<2xf32> to vector<2x1xf32>
    %cst_37 = arith.constant 0.176776692 : f32
    %65 = vector.broadcast %cst_37 : f32 to vector<2x1xf32>
    %66 = arith.mulf %64, %65 : vector<2x1xf32>
    %67 = arith.maximumf %27, %40 : vector<2x1xf32>
    %68 = arith.maximumf %67, %53 : vector<2x1xf32>
    %69 = arith.maximumf %68, %66 : vector<2x1xf32>
    %70 = arith.subf %27, %69 : vector<2x1xf32>
    %71 = math.exp %70 : vector<2x1xf32>
    %72 = arith.subf %40, %69 : vector<2x1xf32>
    %73 = math.exp %72 : vector<2x1xf32>
    %74 = arith.subf %53, %69 : vector<2x1xf32>
    %75 = math.exp %74 : vector<2x1xf32>
    %76 = arith.subf %66, %69 : vector<2x1xf32>
    %77 = math.exp %76 : vector<2x1xf32>
    %78 = arith.addf %71, %73 : vector<2x1xf32>
    %79 = arith.addf %78, %75 : vector<2x1xf32>
    %80 = arith.addf %79, %77 : vector<2x1xf32>
    %cst_38 = arith.constant 1.000000e+00 : f32
    %81 = vector.broadcast %cst_38 : f32 to vector<2x1xf32>
    %82 = arith.divf %81, %80 : vector<2x1xf32>
    %83 = arith.mulf %71, %82 : vector<2x1xf32>
    %84 = vector.broadcast %83 : vector<2x1xf32> to vector<2x32xf32>
    %85 = arith.mulf %84, %22 : vector<2x32xf32>
    %86 = arith.mulf %73, %82 : vector<2x1xf32>
    %87 = vector.broadcast %86 : vector<2x1xf32> to vector<2x32xf32>
    %88 = arith.mulf %87, %35 : vector<2x32xf32>
    %89 = arith.addf %85, %88 : vector<2x32xf32>
    %90 = arith.mulf %75, %82 : vector<2x1xf32>
    %91 = vector.broadcast %90 : vector<2x1xf32> to vector<2x32xf32>
    %92 = arith.mulf %91, %48 : vector<2x32xf32>
    %93 = arith.addf %89, %92 : vector<2x32xf32>
    %94 = arith.mulf %77, %82 : vector<2x1xf32>
    %95 = vector.broadcast %94 : vector<2x1xf32> to vector<2x32xf32>
    %96 = arith.mulf %95, %61 : vector<2x32xf32>
    %97 = arith.addf %93, %96 : vector<2x32xf32>
    %c0_39 = arith.constant 0 : index
    %c0_40 = arith.constant 0 : index
    %98 = vector.load %arg10[%c0_39, %c0_40] : memref<24x32xf32, #tpu.memory_space<vmem>>, vector<24x32xf32>
    %cst_41 = arith.constant dense<0.000000e+00> : vector<2x32xf32>
    %99 = tpu.matmul %0, %98, %cst_41 {dimension_numbers = #tpu.dot_dimension_numbers<[1], [0], [0], [1], [0, 0, 1, 1], [], []>} : vector<2x24xf32>, vector<24x32xf32>, vector<2x32xf32> -> vector<2x32xf32>
    %c0_42 = arith.constant 0 : index
    %c0_43 = arith.constant 0 : index
    %100 = vector.load %arg11[%c0_42, %c0_43] : memref<32x32xf32, #tpu.memory_space<vmem>>, vector<32x32xf32>
    %cst_44 = arith.constant dense<0.000000e+00> : vector<2x32xf32>
    %101 = tpu.matmul %97, %100, %cst_44 {dimension_numbers = #tpu.dot_dimension_numbers<[1], [0], [0], [1], [0, 0, 1, 1], [], []>} : vector<2x32xf32>, vector<32x32xf32>, vector<2x32xf32> -> vector<2x32xf32>
    %102 = arith.addf %99, %101 : vector<2x32xf32>
    %c0_45 = arith.constant 0 : index
    %c0_46 = arith.constant 0 : index
    %103 = vector.load %arg12[%c0_45, %c0_46] : memref<1x32xf32, #tpu.memory_space<vmem>>, vector<1x32xf32>
    %104 = vector.broadcast %103 : vector<1x32xf32> to vector<2x32xf32>
    %105 = arith.addf %102, %104 : vector<2x32xf32>
    %cst_47 = arith.constant 0.000000e+00 : f32
    %106 = vector.broadcast %cst_47 : f32 to vector<2x32xf32>
    %107 = arith.maximumf %105, %106 : vector<2x32xf32>
    %c0_48 = arith.constant 0 : index
    %c0_49 = arith.constant 0 : index
    %108 = vector.load %arg13[%c0_48, %c0_49] : memref<32x128xf32, #tpu.memory_space<vmem>>, vector<32x128xf32>
    %cst_50 = arith.constant dense<0.000000e+00> : vector<2x128xf32>
    %109 = tpu.matmul %107, %108, %cst_50 {dimension_numbers = #tpu.dot_dimension_numbers<[1], [0], [0], [1], [0, 0, 1, 1], [], []>} : vector<2x32xf32>, vector<32x128xf32>, vector<2x128xf32> -> vector<2x128xf32>
    %c0_51 = arith.constant 0 : index
    %c0_52 = arith.constant 0 : index
    %110 = vector.load %arg14[%c0_51, %c0_52] : memref<32x128xf32, #tpu.memory_space<vmem>>, vector<32x128xf32>
    %cst_53 = arith.constant dense<0.000000e+00> : vector<2x128xf32>
    %111 = tpu.matmul %1, %110, %cst_53 {dimension_numbers = #tpu.dot_dimension_numbers<[1], [0], [0], [1], [0, 0, 1, 1], [], []>} : vector<2x32xf32>, vector<32x128xf32>, vector<2x128xf32> -> vector<2x128xf32>
    %112 = arith.addf %109, %111 : vector<2x128xf32>
    %c0_54 = arith.constant 0 : index
    %c0_55 = arith.constant 0 : index
    %113 = vector.load %arg15[%c0_54, %c0_55] : memref<1x128xf32, #tpu.memory_space<vmem>>, vector<1x128xf32>
    %114 = vector.broadcast %113 : vector<1x128xf32> to vector<2x128xf32>
    %115 = arith.addf %112, %114 : vector<2x128xf32>
    %116 = vector.extract_strided_slice %115 {offsets = [0, 0], sizes = [2, 32], strides = [1, 1]} : vector<2x128xf32> to vector<2x32xf32>
    %117 = arith.negf %116 : vector<2x32xf32>
    %118 = math.exp %117 : vector<2x32xf32>
    %cst_56 = arith.constant 1.000000e+00 : f32
    %119 = vector.broadcast %cst_56 : f32 to vector<2x32xf32>
    %120 = arith.addf %119, %118 : vector<2x32xf32>
    %121 = arith.divf %119, %120 : vector<2x32xf32>
    %122 = vector.extract_strided_slice %115 {offsets = [0, 32], sizes = [2, 32], strides = [1, 1]} : vector<2x128xf32> to vector<2x32xf32>
    %123 = arith.negf %122 : vector<2x32xf32>
    %124 = math.exp %123 : vector<2x32xf32>
    %cst_57 = arith.constant 1.000000e+00 : f32
    %125 = vector.broadcast %cst_57 : f32 to vector<2x32xf32>
    %126 = arith.addf %125, %124 : vector<2x32xf32>
    %127 = arith.divf %125, %126 : vector<2x32xf32>
    %128 = vector.extract_strided_slice %115 {offsets = [0, 64], sizes = [2, 32], strides = [1, 1]} : vector<2x128xf32> to vector<2x32xf32>
    %129 = math.tanh %128 : vector<2x32xf32>
    %130 = vector.extract_strided_slice %115 {offsets = [0, 96], sizes = [2, 32], strides = [1, 1]} : vector<2x128xf32> to vector<2x32xf32>
    %131 = arith.negf %130 : vector<2x32xf32>
    %132 = math.exp %131 : vector<2x32xf32>
    %cst_58 = arith.constant 1.000000e+00 : f32
    %133 = vector.broadcast %cst_58 : f32 to vector<2x32xf32>
    %134 = arith.addf %133, %132 : vector<2x32xf32>
    %135 = arith.divf %133, %134 : vector<2x32xf32>
    %136 = arith.mulf %127, %2 : vector<2x32xf32>
    %137 = arith.mulf %121, %129 : vector<2x32xf32>
    %138 = arith.addf %136, %137 : vector<2x32xf32>
    %139 = math.tanh %138 : vector<2x32xf32>
    %140 = arith.mulf %135, %139 : vector<2x32xf32>
    %c0_59 = arith.constant 0 : index
    %c0_60 = arith.constant 0 : index
    %141 = vector.load %arg16[%c0_59, %c0_60] : memref<2x64xf32, #tpu.memory_space<vmem>>, vector<2x32xf32>
    tpu.vector_store %arg16[%c0_59, %c0_60], %140 {strides = array<i32>} : memref<2x64xf32, #tpu.memory_space<vmem>>, vector<2x32xf32>,
    %c0_61 = arith.constant 0 : index
    %c32 = arith.constant 32 : index
    %142 = vector.load %arg16[%c0_61, %c32] : memref<2x64xf32, #tpu.memory_space<vmem>>, vector<2x32xf32>
    tpu.vector_store %arg16[%c0_61, %c32], %138 {strides = array<i32>} : memref<2x64xf32, #tpu.memory_space<vmem>>, vector<2x32xf32>,
    return
  }
  func.func @transform_0(%arg0: i32) -> (i32, i32) {
    %c0_i32 = arith.constant 0 : i32
    %c0_i32_0 = arith.constant 0 : i32
    %c0_i32_1 = arith.constant 0 : i32
    return %c0_i32, %c0_i32_0 : i32, i32
  }
  func.func @transform_1(%arg0: i32) -> (i32, i32) {
    %c0_i32 = arith.constant 0 : i32
    %c0_i32_0 = arith.constant 0 : i32
    %c0_i32_1 = arith.constant 0 : i32
    return %c0_i32, %c0_i32_0 : i32, i32
  }
  func.func @transform_2(%arg0: i32) -> (i32, i32) {
    %c0_i32 = arith.constant 0 : i32
    %c0_i32_0 = arith.constant 0 : i32
    %c0_i32_1 = arith.constant 0 : i32
    return %c0_i32, %c0_i32_0 : i32, i32
  }
  func.func @transform_3(%arg0: i32) -> (i32, i32) {
    %c0_i32 = arith.constant 0 : i32
    %c0_i32_0 = arith.constant 0 : i32
    %c0_i32_1 = arith.constant 0 : i32
    return %c0_i32, %c0_i32_0 : i32, i32
  }
  func.func @transform_4(%arg0: i32) -> (i32, i32) {
    %c0_i32 = arith.constant 0 : i32
    %c0_i32_0 = arith.constant 0 : i32
    %c0_i32_1 = arith.constant 0 : i32
    return %c0_i32, %c0_i32_0 : i32, i32
  }
  func.func @transform_5(%arg0: i32) -> (i32, i32) {
    %c0_i32 = arith.constant 0 : i32
    %c0_i32_0 = arith.constant 0 : i32
    %c0_i32_1 = arith.constant 0 : i32
    return %c0_i32, %c0_i32_0 : i32, i32
  }
  func.func @transform_6(%arg0: i32) -> (i32, i32) {
    %c0_i32 = arith.constant 0 : i32
    %c0_i32_0 = arith.constant 0 : i32
    %c0_i32_1 = arith.constant 0 : i32
    return %c0_i32, %c0_i32_0 : i32, i32
  }
  func.func @transform_7(%arg0: i32) -> (i32, i32) {
    %c0_i32 = arith.constant 0 : i32
    %c0_i32_0 = arith.constant 0 : i32
    %c0_i32_1 = arith.constant 0 : i32
    return %c0_i32, %c0_i32_0 : i32, i32
  }
  func.func @transform_8(%arg0: i32) -> (i32, i32) {
    %c0_i32 = arith.constant 0 : i32
    %c0_i32_0 = arith.constant 0 : i32
    %c0_i32_1 = arith.constant 0 : i32
    return %c0_i32, %c0_i32_0 : i32, i32
  }
  func.func @transform_9(%arg0: i32) -> (i32, i32) {
    %c0_i32 = arith.constant 0 : i32
    %c0_i32_0 = arith.constant 0 : i32
    %c0_i32_1 = arith.constant 0 : i32
    return %c0_i32, %c0_i32_0 : i32, i32
  }
  func.func @transform_10(%arg0: i32) -> (i32, i32) {
    %c0_i32 = arith.constant 0 : i32
    %c0_i32_0 = arith.constant 0 : i32
    %c0_i32_1 = arith.constant 0 : i32
    return %c0_i32, %c0_i32_0 : i32, i32
  }
  func.func @transform_11(%arg0: i32) -> (i32, i32) {
    %c0_i32 = arith.constant 0 : i32
    %c0_i32_0 = arith.constant 0 : i32
    %c0_i32_1 = arith.constant 0 : i32
    return %c0_i32, %c0_i32_0 : i32, i32
  }
  func.func @transform_12(%arg0: i32) -> (i32, i32) {
    %c0_i32 = arith.constant 0 : i32
    %c0_i32_0 = arith.constant 0 : i32
    %c0_i32_1 = arith.constant 0 : i32
    return %c0_i32, %c0_i32_0 : i32, i32
  }
  func.func @transform_13(%arg0: i32) -> (i32, i32) {
    %c0_i32 = arith.constant 0 : i32
    %c0_i32_0 = arith.constant 0 : i32
    %c0_i32_1 = arith.constant 0 : i32
    return %c0_i32, %c0_i32_0 : i32, i32
  }
  func.func @transform_14(%arg0: i32) -> (i32, i32) {
    %c0_i32 = arith.constant 0 : i32
    %c0_i32_0 = arith.constant 0 : i32
    %c0_i32_1 = arith.constant 0 : i32
    return %c0_i32, %c0_i32_0 : i32, i32
  }
  func.func @transform_15(%arg0: i32) -> (i32, i32) {
    %c0_i32 = arith.constant 0 : i32
    %c0_i32_0 = arith.constant 0 : i32
    %c0_i32_1 = arith.constant 0 : i32
    return %c0_i32, %c0_i32_0 : i32, i32
  }
}

</mosaic_0001>

<llo_original>
// kernel: tpu_custom_call.1
$region0: #{tpu_custom_call.1}
  #allocation0 [shape = 'u32[]', space=smem, size = 0x4, offset = 0x4, fixed_abs, tag = 'smem constant byte address 0x4 - core index']
  #allocation1 [shape = 'u32[144,128]{1,0:T(1,128)}', space=vmem, size = 0x12000, scoped, tag = 'internal scratch']
  %s0 = inlined_call_operand.hbm [shape: f32[2,24], index: 0, kind: input, shape index: {}]
  %s1 = inlined_call_operand.vmem [shape: f32[2,32], index: 1, kind: input, shape index: {}]
  %s2 = inlined_call_operand.vmem [shape: f32[2,32], index: 2, kind: input, shape index: {}]
  %s3 = inlined_call_operand.hbm [shape: f32[8,16], index: 3, kind: input, shape index: {}]
  %s4 = inlined_call_operand.hbm [shape: f32[16,32], index: 4, kind: input, shape index: {}]
  %s5 = inlined_call_operand.vmem [shape: f32[1,32], index: 5, kind: input, shape index: {}]
  %s6 = inlined_call_operand.hbm [shape: f32[32,32], index: 6, kind: input, shape index: {}]
  %s7 = inlined_call_operand.hbm [shape: f32[32,64], index: 7, kind: input, shape index: {}]
  %s8 = inlined_call_operand.hbm [shape: f32[1,32], index: 8, kind: input, shape index: {}]
  %s9 = inlined_call_operand.hbm [shape: f32[24,32], index: 9, kind: input, shape index: {}]
  %s10 = inlined_call_operand.vmem [shape: f32[32,32], index: 10, kind: input, shape index: {}]
  %s11 = inlined_call_operand.vmem [shape: f32[1,32], index: 11, kind: input, shape index: {}]
  %s12 = inlined_call_operand.hbm [shape: f32[32,128], index: 12, kind: input, shape index: {}]
  %s13 = inlined_call_operand.hbm [shape: f32[32,128], index: 13, kind: input, shape index: {}]
  %s14 = inlined_call_operand.vmem [shape: f32[1,128], index: 14, kind: input, shape index: {}]
  %s15 = inlined_call_operand.hbm [shape: f32[2,64], index: 15, kind: output, shape index: {}]
  %s16 = sld [smem:[#allocation0]]
  $region106: #{tpu_custom_call.1} parent=0
    _
  %s18 = ssub.s32 1, %s16
  %s19 = scalar_select 0, %s18, %s16
  $region1: #{tpu_custom_call.1} parent=0
    #allocation2 [shape = 'u8[1024]{0}', space=vmem, size = 0x400, scoped, tag = 'input window, operand 0, single buffered']
    #allocation3 [shape = 's32[1]{0}', space=sflag, size = 0x4, scoped, tag = 'scoped memory for tpu_custom_call.1']
    #allocation4 [shape = 's32[1]{0}', space=sflag, size = 0x4, scoped, tag = 'scoped memory for tpu_custom_call.1']
    #allocation5 [shape = 'u8[4096]{0}', space=vmem, size = 0x1000, scoped, tag = 'input window, operand 3, single buffered']
    #allocation6 [shape = 's32[1]{0}', space=sflag, size = 0x4, scoped, tag = 'scoped memory for tpu_custom_call.1']
    #allocation7 [shape = 'u8[8192]{0}', space=vmem, size = 0x2000, scoped, tag = 'input window, operand 4, single buffered']
    #allocation8 [shape = 'u8[16384]{0}', space=vmem, size = 0x4000, scoped, tag = 'input window, operand 6, single buffered']
    #allocation9 [shape = 's32[1]{0}', space=sflag, size = 0x4, scoped, tag = 'scoped memory for tpu_custom_call.1']
    #allocation10 [shape = 'u8[16384]{0}', space=vmem, size = 0x4000, scoped, tag = 'input window, operand 7, single buffered']
    #allocation11 [shape = 'u8[512]{0}', space=vmem, size = 0x400, scoped, tag = 'input window, operand 8, single buffered']
    #allocation12 [shape = 's32[1]{0}', space=sflag, size = 0x4, scoped, tag = 'scoped memory for tpu_custom_call.1']
    #allocation13 [shape = 'u8[12288]{0}', space=vmem, size = 0x3000, scoped, tag = 'input window, operand 9, single buffered']
    #allocation14 [shape = 'u8[16384]{0}', space=vmem, size = 0x4000, scoped, tag = 'input window, operand 12, single buffered']
    #allocation15 [shape = 's32[1]{0}', space=sflag, size = 0x4, scoped, tag = 'scoped memory for tpu_custom_call.1']
    #allocation16 [shape = 'u8[16384]{0}', space=vmem, size = 0x4000, scoped, tag = 'input window, operand 13, single buffered']
    #allocation17 [shape = 'u8[1024]{0}', space=vmem, size = 0x400, scoped, tag = 'output window, operand 0, single buffered']
    %20 = vsyncpa [#allocation3], 0
    %21 = vsyncpa [#allocation6], 0
    %22 = vsyncpa [#allocation9], 0
    %23 = vsyncpa [#allocation12], 0
    %24 = vsyncpa [#allocation15], 0
    %25 = vsyncpa [#allocation4], 0
    // Predicated region
    $region2: #{tpu_custom_call.1} parent=1 // pred_check
      _
    $region3: #{tpu_custom_call.1} parent=1 // pred_check_branch
      %27 = sbr.rel (0) target = $region5
    $region4: #{tpu_custom_call.1} parent=1 // pred_region
      %s29 = ssub.s32 32, 32
      %30 = vsyncadd [#allocation3], %s29
      %s32 = sshll.u32 [#allocation2], 4
      %s33 = int_to_ptr.vmem [resolvable:$true] %s32
      %35 = dma.hbm_to_vmem [thread:$0]  %s0, 32, %s33, [#allocation3]
    $region5: #{tpu_custom_call.1} parent=1 // pred_fallthru
      _
    // Predicated region
    $region6: #{tpu_custom_call.1} parent=1 // pred_check
      _
    $region7: #{tpu_custom_call.1} parent=1 // pred_check_branch
      %37 = sbr.rel (0) target = $region9
    $region8: #{tpu_custom_call.1} parent=1 // pred_region
      _
    $region9: #{tpu_custom_call.1} parent=1 // pred_fallthru
      _
    // Predicated region
    $region10: #{tpu_custom_call.1} parent=1 // pred_check
      _
    $region11: #{tpu_custom_call.1} parent=1 // pred_check_branch
      %39 = sbr.rel (0) target = $region13
    $region12: #{tpu_custom_call.1} parent=1 // pred_region
      _
    $region13: #{tpu_custom_call.1} parent=1 // pred_fallthru
      _
    // Predicated region
    $region14: #{tpu_custom_call.1} parent=1 // pred_check
      _
    $region15: #{tpu_custom_call.1} parent=1 // pred_check_branch
      %41 = sbr.rel (0) target = $region17
    $region16: #{tpu_custom_call.1} parent=1 // pred_region
      %s43 = ssub.s32 128, 128
      %44 = vsyncadd [#allocation6], %s43
      %s46 = sshll.u32 [#allocation5], 4
      %s47 = int_to_ptr.vmem [resolvable:$true] %s46
      %49 = dma.hbm_to_vmem [thread:$0]  %s3, 128, %s47, [#allocation6]
    $region17: #{tpu_custom_call.1} parent=1 // pred_fallthru
      _
    // Predicated region
    $region18: #{tpu_custom_call.1} parent=1 // pred_check
      _
    $region19: #{tpu_custom_call.1} parent=1 // pred_check_branch
      %51 = sbr.rel (0) target = $region21
    $region20: #{tpu_custom_call.1} parent=1 // pred_region
      %s53 = ssub.s32 256, 256
      %54 = vsyncadd [#allocation6], %s53
      %s55 = sshll.u32 [#allocation7], 4
      %s56 = int_to_ptr.vmem [resolvable:$true] %s55
      %61 = dma.hbm_to_vmem [thread:$0]  %s4, 256, %s56, [#allocation6], 128, 128, 8
    $region21: #{tpu_custom_call.1} parent=1 // pred_fallthru
      _
    // Predicated region
    $region22: #{tpu_custom_call.1} parent=1 // pred_check
      _
    $region23: #{tpu_custom_call.1} parent=1 // pred_check_branch
      %63 = sbr.rel (0) target = $region25
    $region24: #{tpu_custom_call.1} parent=1 // pred_region
      _
    $region25: #{tpu_custom_call.1} parent=1 // pred_fallthru
      _
    // Predicated region
    $region26: #{tpu_custom_call.1} parent=1 // pred_check
      _
    $region27: #{tpu_custom_call.1} parent=1 // pred_check_branch
      %65 = sbr.rel (0) target = $region29
    $region28: #{tpu_custom_call.1} parent=1 // pred_region
      %s67 = ssub.s32 512, 512
      %68 = vsyncadd [#allocation9], %s67
      %s69 = sshll.u32 [#allocation8], 4
      %s70 = int_to_ptr.vmem [resolvable:$true] %s69
      %75 = dma.hbm_to_vmem [thread:$0]  %s6, 512, %s70, [#allocation9], 128, 128, 8
    $region29: #{tpu_custom_call.1} parent=1 // pred_fallthru
      _
    // Predicated region
    $region30: #{tpu_custom_call.1} parent=1 // pred_check
      _
    $region31: #{tpu_custom_call.1} parent=1 // pred_check_branch
      %77 = sbr.rel (0) target = $region33
    $region32: #{tpu_custom_call.1} parent=1 // pred_region
      %s79 = ssub.s32 512, 512
      %80 = vsyncadd [#allocation9], %s79
      %s81 = sshll.u32 [#allocation10], 4
      %s82 = int_to_ptr.vmem [resolvable:$true] %s81
      %87 = dma.hbm_to_vmem [thread:$0]  %s7, 512, %s82, [#allocation9], 128, 128, 8
    $region33: #{tpu_custom_call.1} parent=1 // pred_fallthru
      _
    // Predicated region
    $region34: #{tpu_custom_call.1} parent=1 // pred_check
      _
    $region35: #{tpu_custom_call.1} parent=1 // pred_check_branch
      %89 = sbr.rel (0) target = $region37
    $region36: #{tpu_custom_call.1} parent=1 // pred_region
      %s91 = ssub.s32 16, 16
      %92 = vsyncadd [#allocation12], %s91
      %s94 = sshll.u32 [#allocation11], 4
      %s95 = int_to_ptr.vmem [resolvable:$true] %s94
      %97 = dma.hbm_to_vmem [thread:$0]  %s8, 16, %s95, [#allocation12]
    $region37: #{tpu_custom_call.1} parent=1 // pred_fallthru
      _
    // Predicated region
    $region38: #{tpu_custom_call.1} parent=1 // pred_check
      _
    $region39: #{tpu_custom_call.1} parent=1 // pred_check_branch
      %99 = sbr.rel (0) target = $region41
    $region40: #{tpu_custom_call.1} parent=1 // pred_region
      %s101 = ssub.s32 384, 384
      %102 = vsyncadd [#allocation12], %s101
      %s103 = sshll.u32 [#allocation13], 4
      %s104 = int_to_ptr.vmem [resolvable:$true] %s103
      %109 = dma.hbm_to_vmem [thread:$0]  %s9, 384, %s104, [#allocation12], 128, 128, 8
    $region41: #{tpu_custom_call.1} parent=1 // pred_fallthru
      _
    // Predicated region
    $region42: #{tpu_custom_call.1} parent=1 // pred_check
      _
    $region43: #{tpu_custom_call.1} parent=1 // pred_check_branch
      %111 = sbr.rel (0) target = $region45
    $region44: #{tpu_custom_call.1} parent=1 // pred_region
      _
    $region45: #{tpu_custom_call.1} parent=1 // pred_fallthru
      _
    // Predicated region
    $region46: #{tpu_custom_call.1} parent=1 // pred_check
      _
    $region47: #{tpu_custom_call.1} parent=1 // pred_check_branch
      %113 = sbr.rel (0) target = $region49
    $region48: #{tpu_custom_call.1} parent=1 // pred_region
      _
    $region49: #{tpu_custom_call.1} parent=1 // pred_fallthru
      _
    // Predicated region
    $region50: #{tpu_custom_call.1} parent=1 // pred_check
      _
    $region51: #{tpu_custom_call.1} parent=1 // pred_check_branch
      %115 = sbr.rel (0) target = $region53
    $region52: #{tpu_custom_call.1} parent=1 // pred_region
      %s117 = ssub.s32 512, 512
      %118 = vsyncadd [#allocation15], %s117
      %s119 = sshll.u32 [#allocation14], 4
      %s120 = int_to_ptr.vmem [resolvable:$true] %s119
      %125 = dma.hbm_to_vmem [thread:$0]  %s12, 512, %s120, [#allocation15], 128, 128, 8
    $region53: #{tpu_custom_call.1} parent=1 // pred_fallthru
      _
    // Predicated region
    $region54: #{tpu_custom_call.1} parent=1 // pred_check
      _
    $region55: #{tpu_custom_call.1} parent=1 // pred_check_branch
      %127 = sbr.rel (0) target = $region57
    $region56: #{tpu_custom_call.1} parent=1 // pred_region
      %s129 = ssub.s32 512, 512
      %130 = vsyncadd [#allocation15], %s129
      %s131 = sshll.u32 [#allocation16], 4
      %s132 = int_to_ptr.vmem [resolvable:$true] %s131
      %137 = dma.hbm_to_vmem [thread:$0]  %s13, 512, %s132, [#allocation15], 128, 128, 8
    $region57: #{tpu_custom_call.1} parent=1 // pred_fallthru
      _
    // Predicated region
    $region58: #{tpu_custom_call.1} parent=1 // pred_check
      _
    $region59: #{tpu_custom_call.1} parent=1 // pred_check_branch
      %139 = sbr.rel (0) target = $region61
    $region60: #{tpu_custom_call.1} parent=1 // pred_region
      _
    $region61: #{tpu_custom_call.1} parent=1 // pred_fallthru
      _
    // Predicated region
    $region62: #{tpu_custom_call.1} parent=1 // pred_check
      _
    $region63: #{tpu_custom_call.1} parent=1 // pred_check_branch
      %141 = sbr.rel (0) target = $region65
    $region64: #{tpu_custom_call.1} parent=1 // pred_region
      %142 = dma.done [#allocation3], 32
    $region65: #{tpu_custom_call.1} parent=1 // pred_fallthru
      _
    // Predicated region
    $region66: #{tpu_custom_call.1} parent=1 // pred_check
      _
    $region67: #{tpu_custom_call.1} parent=1 // pred_check_branch
      %144 = sbr.rel (0) target = $region69
    $region68: #{tpu_custom_call.1} parent=1 // pred_region
      %145 = dma.done [#allocation6], 128
    $region69: #{tpu_custom_call.1} parent=1 // pred_fallthru
      _
    // Predicated region
    $region70: #{tpu_custom_call.1} parent=1 // pred_check
      _
    $region71: #{tpu_custom_call.1} parent=1 // pred_check_branch
      %147 = sbr.rel (0) target = $region73
    $region72: #{tpu_custom_call.1} parent=1 // pred_region
      %148 = dma.done [#allocation6], 256
    $region73: #{tpu_custom_call.1} parent=1 // pred_fallthru
      _
    // Predicated region
    $region74: #{tpu_custom_call.1} parent=1 // pred_check
      _
    $region75: #{tpu_custom_call.1} parent=1 // pred_check_branch
      %150 = sbr.rel (0) target = $region77
    $region76: #{tpu_custom_call.1} parent=1 // pred_region
      %151 = dma.done [#allocation9], 512
    $region77: #{tpu_custom_call.1} parent=1 // pred_fallthru
      _
    // Predicated region
    $region78: #{tpu_custom_call.1} parent=1 // pred_check
      _
    $region79: #{tpu_custom_call.1} parent=1 // pred_check_branch
      %153 = sbr.rel (0) target = $region81
    $region80: #{tpu_custom_call.1} parent=1 // pred_region
      %154 = dma.done [#allocation9], 512
    $region81: #{tpu_custom_call.1} parent=1 // pred_fallthru
      _
    // Predicated region
    $region82: #{tpu_custom_call.1} parent=1 // pred_check
      _
    $region83: #{tpu_custom_call.1} parent=1 // pred_check_branch
      %156 = sbr.rel (0) target = $region85
    $region84: #{tpu_custom_call.1} parent=1 // pred_region
      %157 = dma.done [#allocation12], 16
    $region85: #{tpu_custom_call.1} parent=1 // pred_fallthru
      _
    // Predicated region
    $region86: #{tpu_custom_call.1} parent=1 // pred_check
      _
    $region87: #{tpu_custom_call.1} parent=1 // pred_check_branch
      %159 = sbr.rel (0) target = $region89
    $region88: #{tpu_custom_call.1} parent=1 // pred_region
      %160 = dma.done [#allocation12], 384
    $region89: #{tpu_custom_call.1} parent=1 // pred_fallthru
      _
    // Predicated region
    $region90: #{tpu_custom_call.1} parent=1 // pred_check
      _
    $region91: #{tpu_custom_call.1} parent=1 // pred_check_branch
      %162 = sbr.rel (0) target = $region93
    $region92: #{tpu_custom_call.1} parent=1 // pred_region
      %163 = dma.done [#allocation15], 512
    $region93: #{tpu_custom_call.1} parent=1 // pred_fallthru
      _
    // Predicated region
    $region94: #{tpu_custom_call.1} parent=1 // pred_check
      _
    $region95: #{tpu_custom_call.1} parent=1 // pred_check_branch
      %165 = sbr.rel (0) target = $region97
    $region96: #{tpu_custom_call.1} parent=1 // pred_region
      %166 = dma.done [#allocation15], 512
    $region97: #{tpu_custom_call.1} parent=1 // pred_fallthru
      _
    %v167 = vld [vmem:[#allocation2] sm:$0x3]
    %v168 = vld [vmem:[%s1] sm:$0x3]
    %v169 = vld [vmem:[%s2] sm:$0x3]
    %v170 = vld [vmem:[#allocation5] sm:$0xff]
    %v171 = vld [vmem:[#allocation7] sm:$0xff]
    %v172 = vld [vmem:[#allocation7 + $0x8] sm:$0xff]
    %v173 = vld [vmem:[%s5] sm:$0x1]
    %v175 = vlaneseq
    %v176 = vshrl.u32 %v175, 7
    %v177 = vsub.s32 0, %v176
    %v178 = vrot.slane %v173, %v177
    %vm180 = vcmask 130048
    %v182 = vsel %vm180, %v170, 0
    %184 = vmatprep.subr.mxu0 0.0
    %185 = vmatpush1.msra.mxu0 %v171
    %186 = vmatprep.subr.mxu0 0.0
    %187 = vmatpush1.msra.mxu0 %v172
    %188 = vmatprep.subr.mxu0 0.0
    %189 = vmatpush1.msra.mxu0 0.0
    %190 = vmatprep.subr.mxu0 0.0
    %191 = vmatpush1.msra.mxu0 0.0
    %192 = vmatprep.subr.mxu0 0.0
    %193 = vmatpush1.msra.mxu0 0.0
    %194 = vmatprep.subr.mxu0 0.0
    %195 = vmatpush1.msra.mxu0 0.0
    %196 = vmatprep.subr.mxu0 0.0
    %197 = vmatpush1.msra.mxu0 0.0
    %198 = vmatprep.subr.mxu0 0.0
    %199 = vmatpush1.msra.mxu0 0.0
    %200 = vmatprep.subr.mxu0 0.0
    %201 = vmatpush1.msra.mxu0 0.0
    %202 = vmatprep.subr.mxu0 0.0
    %203 = vmatpush1.msra.mxu0 0.0
    %204 = vmatprep.subr.mxu0 0.0
    %205 = vmatpush1.msra.mxu0 0.0
    %206 = vmatprep.subr.mxu0 0.0
    %207 = vmatpush1.msra.mxu0 0.0
    %208 = vmatprep.subr.mxu0 0.0
    %209 = vmatpush1.msra.mxu0 0.0
    %210 = vmatprep.subr.mxu0 0.0
    %211 = vmatpush1.msra.mxu0 0.0
    %212 = vmatprep.subr.mxu0 0.0
    %213 = vmatpush1.msra.mxu0 0.0
    %214 = vmatprep.subr.mxu0 0.0
    %215 = vmatpush1.msra.mxu0 0.0
    %216 = vmatprep.subr.mxu0 0.0
    %217 = vmatpush1.msra.mxu0 0.0
    %218 = vmatprep.subr.mxu0 0.0
    %219 = vmatpush1.msra.mxu0 0.0
    %220 = vmatprep.subr.mxu0 0.0
    %221 = vmatpush1.msra.mxu0 0.0
    %222 = vmatprep.subr.mxu0 0.0
    %223 = vmatpush1.msra.mxu0 0.0
    %224 = vmatprep.subr.mxu0 0.0
    %225 = vmatpush1.msra.mxu0 0.0
    %226 = vmatprep.subr.mxu0 0.0
    %227 = vmatpush1.msra.mxu0 0.0
    %228 = vmatprep.subr.mxu0 0.0
    %229 = vmatpush1.msra.mxu0 0.0
    %230 = vmatprep.subr.mxu0 0.0
    %231 = vmatpush1.msra.mxu0 0.0
    %232 = vmatprep.subr.mxu0 0.0
    %233 = vmatpush1.msra.mxu0 0.0
    %234 = vmatprep.subr.mxu0 0.0
    %235 = vmatpush1.msra.mxu0 0.0
    %236 = vmatprep.subr.mxu0 0.0
    %237 = vmatpush1.msra.mxu0 0.0
    %238 = vmatprep.subr.mxu0 0.0
    %239 = vmatpush1.msra.mxu0 0.0
    %240 = vmatprep.subr.mxu0 0.0
    %241 = vmatpush1.msra.mxu0 0.0
    %242 = vmatprep.subr.mxu0 0.0
    %243 = vmatpush1.msra.mxu0 0.0
    %244 = vmatprep.subr.mxu0 0.0
    %245 = vmatpush1.msra.mxu0 0.0
    %246 = vmatprep.subr.mxu0 0.0
    %247 = vmatpush1.msra.mxu0 0.0
    %248 = vmatprep.mubr.f32.mxu0 0.0
    %249 = vmatmul.mubr.f32.gmra.mrb[0].mxu0 %v182
    %v250 = vpop.f32.mrb[0].mxu0
    %v251 = vadd.f32 %v178, %v250
    %v252 = vpop.f32.mrb[0].mxu0
    %253 = vdwg.mxu0
    %v254 = vmax.f32 %v251, 0.0
    %v255 = vld [vmem:[#allocation8] sm:$0xff]
    %v256 = vld [vmem:[#allocation8 + $0x8] sm:$0xff]
    %v257 = vld [vmem:[#allocation8 + $0x10] sm:$0xff]
    %v258 = vld [vmem:[#allocation8 + $0x18] sm:$0xff]
    %vm259 = vcmask 261120
    %v261 = vsel %vm259, %v168, 0
    %263 = vmatprep.subr.mxu0 0.0
    %264 = vmatpush1.msra.mxu0 %v255
    %265 = vmatprep.subr.mxu0 0.0
    %266 = vmatpush1.msra.mxu0 %v256
    %267 = vmatprep.subr.mxu0 0.0
    %268 = vmatpush1.msra.mxu0 %v257
    %269 = vmatprep.subr.mxu0 0.0
    %270 = vmatpush1.msra.mxu0 %v258
    %271 = vmatprep.subr.mxu0 0.0
    %272 = vmatpush1.msra.mxu0 0.0
    %273 = vmatprep.subr.mxu0 0.0
    %274 = vmatpush1.msra.mxu0 0.0
    %275 = vmatprep.subr.mxu0 0.0
    %276 = vmatpush1.msra.mxu0 0.0
    %277 = vmatprep.subr.mxu0 0.0
    %278 = vmatpush1.msra.mxu0 0.0
    %279 = vmatprep.subr.mxu0 0.0
    %280 = vmatpush1.msra.mxu0 0.0
    %281 = vmatprep.subr.mxu0 0.0
    %282 = vmatpush1.msra.mxu0 0.0
    %283 = vmatprep.subr.mxu0 0.0
    %284 = vmatpush1.msra.mxu0 0.0
    %285 = vmatprep.subr.mxu0 0.0
    %286 = vmatpush1.msra.mxu0 0.0
    %287 = vmatprep.subr.mxu0 0.0
    %288 = vmatpush1.msra.mxu0 0.0
    %289 = vmatprep.subr.mxu0 0.0
    %290 = vmatpush1.msra.mxu0 0.0
    %291 = vmatprep.subr.mxu0 0.0
    %292 = vmatpush1.msra.mxu0 0.0
    %293 = vmatprep.subr.mxu0 0.0
    %294 = vmatpush1.msra.mxu0 0.0
    %295 = vmatprep.subr.mxu0 0.0
    %296 = vmatpush1.msra.mxu0 0.0
    %297 = vmatprep.subr.mxu0 0.0
    %298 = vmatpush1.msra.mxu0 0.0
    %299 = vmatprep.subr.mxu0 0.0
    %300 = vmatpush1.msra.mxu0 0.0
    %301 = vmatprep.subr.mxu0 0.0
    %302 = vmatpush1.msra.mxu0 0.0
    %303 = vmatprep.subr.mxu0 0.0
    %304 = vmatpush1.msra.mxu0 0.0
    %305 = vmatprep.subr.mxu0 0.0
    %306 = vmatpush1.msra.mxu0 0.0
    %307 = vmatprep.subr.mxu0 0.0
    %308 = vmatpush1.msra.mxu0 0.0
    %309 = vmatprep.subr.mxu0 0.0
    %310 = vmatpush1.msra.mxu0 0.0
    %311 = vmatprep.subr.mxu0 0.0
    %312 = vmatpush1.msra.mxu0 0.0
    %313 = vmatprep.subr.mxu0 0.0
    %314 = vmatpush1.msra.mxu0 0.0
    %315 = vmatprep.subr.mxu0 0.0
    %316 = vmatpush1.msra.mxu0 0.0
    %317 = vmatprep.subr.mxu0 0.0
    %318 = vmatpush1.msra.mxu0 0.0
    %319 = vmatprep.subr.mxu0 0.0
    %320 = vmatpush1.msra.mxu0 0.0
    %321 = vmatprep.subr.mxu0 0.0
    %322 = vmatpush1.msra.mxu0 0.0
    %323 = vmatprep.subr.mxu0 0.0
    %324 = vmatpush1.msra.mxu0 0.0
    %325 = vmatprep.subr.mxu0 0.0
    %326 = vmatpush1.msra.mxu0 0.0
    %327 = vmatprep.mubr.f32.mxu0 0.0
    %328 = vmatmul.mubr.f32.gmra.mrb[0].mxu0 %v261
    %v329 = vpop.f32.mrb[0].mxu0
    %v330 = vadd.f32 0.0, %v329
    %v331 = vpop.f32.mrb[0].mxu0
    %332 = vdwg.mxu0
    %v333 = vld [vmem:[#allocation10] sm:$0xff]
    %v334 = vld [vmem:[#allocation10 + $0x8] sm:$0xff]
    %v335 = vld [vmem:[#allocation10 + $0x10] sm:$0xff]
    %v336 = vld [vmem:[#allocation10 + $0x18] sm:$0xff]
    %v338 = vsel %vm259, %v254, 0
    %340 = vmatprep.subr.mxu0 0.0
    %341 = vmatpush1.msra.mxu0 %v333
    %342 = vmatprep.subr.mxu0 0.0
    %343 = vmatpush1.msra.mxu0 %v334
    %344 = vmatprep.subr.mxu0 0.0
    %345 = vmatpush1.msra.mxu0 %v335
    %346 = vmatprep.subr.mxu0 0.0
    %347 = vmatpush1.msra.mxu0 %v336
    %348 = vmatprep.subr.mxu0 0.0
    %349 = vmatpush1.msra.mxu0 0.0
    %350 = vmatprep.subr.mxu0 0.0
    %351 = vmatpush1.msra.mxu0 0.0
    %352 = vmatprep.subr.mxu0 0.0
    %353 = vmatpush1.msra.mxu0 0.0
    %354 = vmatprep.subr.mxu0 0.0
    %355 = vmatpush1.msra.mxu0 0.0
    %356 = vmatprep.subr.mxu0 0.0
    %357 = vmatpush1.msra.mxu0 0.0
    %358 = vmatprep.subr.mxu0 0.0
    %359 = vmatpush1.msra.mxu0 0.0
    %360 = vmatprep.subr.mxu0 0.0
    %361 = vmatpush1.msra.mxu0 0.0
    %362 = vmatprep.subr.mxu0 0.0
    %363 = vmatpush1.msra.mxu0 0.0
    %364 = vmatprep.subr.mxu0 0.0
    %365 = vmatpush1.msra.mxu0 0.0
    %366 = vmatprep.subr.mxu0 0.0
    %367 = vmatpush1.msra.mxu0 0.0
    %368 = vmatprep.subr.mxu0 0.0
    %369 = vmatpush1.msra.mxu0 0.0
    %370 = vmatprep.subr.mxu0 0.0
    %371 = vmatpush1.msra.mxu0 0.0
    %372 = vmatprep.subr.mxu0 0.0
    %373 = vmatpush1.msra.mxu0 0.0
    %374 = vmatprep.subr.mxu0 0.0
    %375 = vmatpush1.msra.mxu0 0.0
    %376 = vmatprep.subr.mxu0 0.0
    %377 = vmatpush1.msra.mxu0 0.0
    %378 = vmatprep.subr.mxu0 0.0
    %379 = vmatpush1.msra.mxu0 0.0
    %380 = vmatprep.subr.mxu0 0.0
    %381 = vmatpush1.msra.mxu0 0.0
    %382 = vmatprep.subr.mxu0 0.0
    %383 = vmatpush1.msra.mxu0 0.0
    %384 = vmatprep.subr.mxu0 0.0
    %385 = vmatpush1.msra.mxu0 0.0
    %386 = vmatprep.subr.mxu0 0.0
    %387 = vmatpush1.msra.mxu0 0.0
    %388 = vmatprep.subr.mxu0 0.0
    %389 = vmatpush1.msra.mxu0 0.0
    %390 = vmatprep.subr.mxu0 0.0
    %391 = vmatpush1.msra.mxu0 0.0
    %392 = vmatprep.subr.mxu0 0.0
    %393 = vmatpush1.msra.mxu0 0.0
    %394 = vmatprep.subr.mxu0 0.0
    %395 = vmatpush1.msra.mxu0 0.0
    %396 = vmatprep.subr.mxu0 0.0
    %397 = vmatpush1.msra.mxu0 0.0
    %398 = vmatprep.subr.mxu0 0.0
    %399 = vmatpush1.msra.mxu0 0.0
    %400 = vmatprep.subr.mxu0 0.0
    %401 = vmatpush1.msra.mxu0 0.0
    %402 = vmatprep.subr.mxu0 0.0
    %403 = vmatpush1.msra.mxu0 0.0
    %404 = vmatprep.mubr.f32.mxu0 0.0
    %405 = vmatmul.mubr.f32.gmra.mrb[0].mxu0 %v338
    %v406 = vpop.f32.mrb[0].mxu0
    %v407 = vadd.f32 0.0, %v406
    %v408 = vpop.f32.mrb[0].mxu0
    %409 = vdwg.mxu0
    %v410 = vld [vmem:[#allocation11] sm:$0x1]
    %v412 = vlaneseq
    %v413 = vshrl.u32 %v412, 7
    %v414 = vsub.s32 0, %v413
    %v415 = vrot.slane %v410, %v414
    %416 = vrot.lane.b32.xlu0 %v415, 32
    %v417 = vpop.permute.xlu0 %416
    %v419 = vadd.f32 %v407, %v417
    %v420 = vmax.f32 %v419, 0.0
    %v421 = vmul.f32 %v330, %v407
    %vm422 = vcmask 254976
    %v423 = vsel %vm422, %v421, 0.0
    %424 = vadd.xlane.f32.xlu0 %v423
    %v425 = vpop.xlane.xlu0 %424
    %v426 = vmul.f32 %v425, 0.17677669
    %v428 = vrot.slane %v407, 2
    %v430 = vmul.f32 %v330, %v428
    %v431 = vsel %vm422, %v430, 0.0
    %432 = vadd.xlane.f32.xlu0 %v431
    %v433 = vpop.xlane.xlu0 %432
    %v434 = vmul.f32 %v433, 0.17677669
    %v435 = vrot.slane %v407, 4
    %v437 = vmul.f32 %v330, %v435
    %v438 = vsel %vm422, %v437, 0.0
    %439 = vadd.xlane.f32.xlu0 %v438
    %v440 = vpop.xlane.xlu0 %439
    %v441 = vmul.f32 %v440, 0.17677669
    %v442 = vrot.slane %v407, 6
    %v444 = vmul.f32 %v330, %v442
    %v445 = vsel %vm422, %v444, 0.0
    %446 = vadd.xlane.f32.xlu0 %v445
    %v447 = vpop.xlane.xlu0 %446
    %v448 = vmul.f32 %v447, 0.17677669
    %v449 = vmax.f32 %v426, %v434
    %v450 = vmax.f32 %v449, %v441
    %v451 = vmax.f32 %v450, %v448
    %v452 = vsub.f32 %v426, %v451
    %v453 = vmul.f32 %v452, 1.442695
    %v454 = vpow.pop %v453
    %v455 = vsub.f32 %v434, %v451
    %v456 = vmul.f32 %v455, 1.442695
    %v457 = vpow.pop %v456
    %v458 = vsub.f32 %v441, %v451
    %v459 = vmul.f32 %v458, 1.442695
    %v460 = vpow.pop %v459
    %v461 = vsub.f32 %v448, %v451
    %v462 = vmul.f32 %v461, 1.442695
    %v463 = vpow.pop %v462
    %v464 = vadd.f32 %v454, %v457
    %v465 = vadd.f32 %v464, %v460
    %v466 = vadd.f32 %v465, %v463
    %v467 = vrcp.pop %v466
    %v468 = vmul.f32 1.0, %v467
    %v469 = vmul.f32 %v454, %v468
    %v470 = vmul.f32 %v469, %v420
    %v471 = vmul.f32 %v457, %v468
    %v473 = vrot.slane %v420, 2
    %474 = vrot.lane.b32.xlu0 %v473, 96
    %v475 = vpop.permute.xlu0 %474
    %v477 = vmul.f32 %v471, %v475
    %479 = vrot.lane.b32.xlu0 %v477, 32
    %v480 = vpop.permute.xlu0 %479
    %v482 = vadd.f32 %v470, %v480
    %v483 = vmul.f32 %v460, %v468
    %v484 = vrot.slane %v420, 4
    %485 = vrot.lane.b32.xlu0 %v484, 96
    %v486 = vpop.permute.xlu0 %485
    %v488 = vmul.f32 %v483, %v486
    %490 = vrot.lane.b32.xlu0 %v488, 32
    %v491 = vpop.permute.xlu0 %490
    %v493 = vadd.f32 %v482, %v491
    %v494 = vmul.f32 %v463, %v468
    %v495 = vrot.slane %v420, 6
    %496 = vrot.lane.b32.xlu0 %v495, 96
    %v497 = vpop.permute.xlu0 %496
    %v499 = vmul.f32 %v494, %v497
    %501 = vrot.lane.b32.xlu0 %v499, 32
    %v502 = vpop.permute.xlu0 %501
    %v504 = vadd.f32 %v493, %v502
    %v505 = vld [vmem:[#allocation13] sm:$0xff]
    %v506 = vld [vmem:[#allocation13 + $0x8] sm:$0xff]
    %v507 = vld [vmem:[#allocation13 + $0x10] sm:$0xff]
    %v508 = vld [vmem:[%s10] sm:$0xff]
    %v509 = vld [vmem:[%s10 + $0x8] sm:$0xff]
    %v510 = vld [vmem:[%s10 + $0x10] sm:$0xff]
    %v511 = vld [vmem:[%s10 + $0x18] sm:$0xff]
    %513 = vrot.lane.b32.xlu0 %v504, 96
    %v514 = vpop.permute.xlu0 %513
    %v515 = vsel %vm259, %v514, 0
    %517 = vmatprep.subr.mxu0 0.0
    %518 = vmatpush1.msra.mxu0 %v508
    %519 = vmatprep.subr.mxu0 0.0
    %520 = vmatpush1.msra.mxu0 %v509
    %521 = vmatprep.subr.mxu0 0.0
    %522 = vmatpush1.msra.mxu0 %v510
    %523 = vmatprep.subr.mxu0 0.0
    %524 = vmatpush1.msra.mxu0 %v511
    %525 = vmatprep.subr.mxu0 0.0
    %526 = vmatpush1.msra.mxu0 0.0
    %527 = vmatprep.subr.mxu0 0.0
    %528 = vmatpush1.msra.mxu0 0.0
    %529 = vmatprep.subr.mxu0 0.0
    %530 = vmatpush1.msra.mxu0 0.0
    %531 = vmatprep.subr.mxu0 0.0
    %532 = vmatpush1.msra.mxu0 0.0
    %533 = vmatprep.subr.mxu0 0.0
    %534 = vmatpush1.msra.mxu0 0.0
    %535 = vmatprep.subr.mxu0 0.0
    %536 = vmatpush1.msra.mxu0 0.0
    %537 = vmatprep.subr.mxu0 0.0
    %538 = vmatpush1.msra.mxu0 0.0
    %539 = vmatprep.subr.mxu0 0.0
    %540 = vmatpush1.msra.mxu0 0.0
    %541 = vmatprep.subr.mxu0 0.0
    %542 = vmatpush1.msra.mxu0 0.0
    %543 = vmatprep.subr.mxu0 0.0
    %544 = vmatpush1.msra.mxu0 0.0
    %545 = vmatprep.subr.mxu0 0.0
    %546 = vmatpush1.msra.mxu0 0.0
    %547 = vmatprep.subr.mxu0 0.0
    %548 = vmatpush1.msra.mxu0 0.0
    %549 = vmatprep.subr.mxu0 0.0
    %550 = vmatpush1.msra.mxu0 0.0
    %551 = vmatprep.subr.mxu0 0.0
    %552 = vmatpush1.msra.mxu0 0.0
    %553 = vmatprep.subr.mxu0 0.0
    %554 = vmatpush1.msra.mxu0 0.0
    %555 = vmatprep.subr.mxu0 0.0
    %556 = vmatpush1.msra.mxu0 0.0
    %557 = vmatprep.subr.mxu0 0.0
    %558 = vmatpush1.msra.mxu0 0.0
    %559 = vmatprep.subr.mxu0 0.0
    %560 = vmatpush1.msra.mxu0 0.0
    %561 = vmatprep.subr.mxu0 0.0
    %562 = vmatpush1.msra.mxu0 0.0
    %563 = vmatprep.subr.mxu0 0.0
    %564 = vmatpush1.msra.mxu0 0.0
    %565 = vmatprep.subr.mxu0 0.0
    %566 = vmatpush1.msra.mxu0 0.0
    %567 = vmatprep.subr.mxu0 0.0
    %568 = vmatpush1.msra.mxu0 0.0
    %569 = vmatprep.subr.mxu0 0.0
    %570 = vmatpush1.msra.mxu0 0.0
    %571 = vmatprep.subr.mxu0 0.0
    %572 = vmatpush1.msra.mxu0 0.0
    %573 = vmatprep.subr.mxu0 0.0
    %574 = vmatpush1.msra.mxu0 0.0
    %575 = vmatprep.subr.mxu0 0.0
    %576 = vmatpush1.msra.mxu0 0.0
    %577 = vmatprep.subr.mxu0 0.0
    %578 = vmatpush1.msra.mxu0 0.0
    %579 = vmatprep.subr.mxu0 0.0
    %580 = vmatpush1.msra.mxu0 0.0
    %581 = vmatprep.mubr.f32.mxu0 0.0
    %582 = vmatmul.mubr.f32.gmra.mrb[0].mxu0 %v515
    %v583 = vpop.f32.mrb[0].mxu0
    %v584 = vadd.f32 0.0, %v583
    %v585 = vpop.f32.mrb[0].mxu0
    %586 = vdwg.mxu0
    %vm587 = vcmask 195584
    %v589 = vsel %vm587, %v167, 0
    %591 = vmatprep.subr.mxu0 0.0
    %592 = vmatpush1.msra.mxu0 %v505
    %593 = vmatprep.subr.mxu0 0.0
    %594 = vmatpush1.msra.mxu0 %v506
    %595 = vmatprep.subr.mxu0 0.0
    %596 = vmatpush1.msra.mxu0 %v507
    %597 = vmatprep.subr.mxu0 0.0
    %598 = vmatpush1.msra.mxu0 0.0
    %599 = vmatprep.subr.mxu0 0.0
    %600 = vmatpush1.msra.mxu0 0.0
    %601 = vmatprep.subr.mxu0 0.0
    %602 = vmatpush1.msra.mxu0 0.0
    %603 = vmatprep.subr.mxu0 0.0
    %604 = vmatpush1.msra.mxu0 0.0
    %605 = vmatprep.subr.mxu0 0.0
    %606 = vmatpush1.msra.mxu0 0.0
    %607 = vmatprep.subr.mxu0 0.0
    %608 = vmatpush1.msra.mxu0 0.0
    %609 = vmatprep.subr.mxu0 0.0
    %610 = vmatpush1.msra.mxu0 0.0
    %611 = vmatprep.subr.mxu0 0.0
    %612 = vmatpush1.msra.mxu0 0.0
    %613 = vmatprep.subr.mxu0 0.0
    %614 = vmatpush1.msra.mxu0 0.0
    %615 = vmatprep.subr.mxu0 0.0
    %616 = vmatpush1.msra.mxu0 0.0
    %617 = vmatprep.subr.mxu0 0.0
    %618 = vmatpush1.msra.mxu0 0.0
    %619 = vmatprep.subr.mxu0 0.0
    %620 = vmatpush1.msra.mxu0 0.0
    %621 = vmatprep.subr.mxu0 0.0
    %622 = vmatpush1.msra.mxu0 0.0
    %623 = vmatprep.subr.mxu0 0.0
    %624 = vmatpush1.msra.mxu0 0.0
    %625 = vmatprep.subr.mxu0 0.0
    %626 = vmatpush1.msra.mxu0 0.0
    %627 = vmatprep.subr.mxu0 0.0
    %628 = vmatpush1.msra.mxu0 0.0
    %629 = vmatprep.subr.mxu0 0.0
    %630 = vmatpush1.msra.mxu0 0.0
    %631 = vmatprep.subr.mxu0 0.0
    %632 = vmatpush1.msra.mxu0 0.0
    %633 = vmatprep.subr.mxu0 0.0
    %634 = vmatpush1.msra.mxu0 0.0
    %635 = vmatprep.subr.mxu0 0.0
    %636 = vmatpush1.msra.mxu0 0.0
    %637 = vmatprep.subr.mxu0 0.0
    %638 = vmatpush1.msra.mxu0 0.0
    %639 = vmatprep.subr.mxu0 0.0
    %640 = vmatpush1.msra.mxu0 0.0
    %641 = vmatprep.subr.mxu0 0.0
    %642 = vmatpush1.msra.mxu0 0.0
    %643 = vmatprep.subr.mxu0 0.0
    %644 = vmatpush1.msra.mxu0 0.0
    %645 = vmatprep.subr.mxu0 0.0
    %646 = vmatpush1.msra.mxu0 0.0
    %647 = vmatprep.subr.mxu0 0.0
    %648 = vmatpush1.msra.mxu0 0.0
    %649 = vmatprep.subr.mxu0 0.0
    %650 = vmatpush1.msra.mxu0 0.0
    %651 = vmatprep.subr.mxu0 0.0
    %652 = vmatpush1.msra.mxu0 0.0
    %653 = vmatprep.subr.mxu0 0.0
    %654 = vmatpush1.msra.mxu0 0.0
    %655 = vmatprep.mubr.f32.mxu0 0.0
    %656 = vmatmul.mubr.f32.gmra.mrb[0].mxu0 %v589
    %v657 = vpop.f32.mrb[0].mxu0
    %v658 = vadd.f32 %v584, %v657
    %v659 = vpop.f32.mrb[0].mxu0
    %660 = vdwg.mxu0
    %v661 = vld [vmem:[%s11] sm:$0x1]
    %v663 = vlaneseq
    %v664 = vshrl.u32 %v663, 7
    %v665 = vsub.s32 0, %v664
    %v666 = vrot.slane %v661, %v665
    %v668 = vadd.f32 %v658, %v666
    %v669 = vmax.f32 %v668, 0.0
    %v670 = vld [vmem:[#allocation14] sm:$0xff]
    %v671 = vld [vmem:[#allocation14 + $0x8] sm:$0xff]
    %v672 = vld [vmem:[#allocation14 + $0x10] sm:$0xff]
    %v673 = vld [vmem:[#allocation14 + $0x18] sm:$0xff]
    %v674 = vld [vmem:[#allocation16] sm:$0xff]
    %v675 = vld [vmem:[#allocation16 + $0x8] sm:$0xff]
    %v676 = vld [vmem:[#allocation16 + $0x10] sm:$0xff]
    %v677 = vld [vmem:[#allocation16 + $0x18] sm:$0xff]
    %678 = vmatprep.subr.mxu0 0.0
    %679 = vmatpush1.msra.mxu0 %v674
    %680 = vmatprep.subr.mxu0 0.0
    %681 = vmatpush1.msra.mxu0 %v675
    %682 = vmatprep.subr.mxu0 0.0
    %683 = vmatpush1.msra.mxu0 %v676
    %684 = vmatprep.subr.mxu0 0.0
    %685 = vmatpush1.msra.mxu0 %v677
    %686 = vmatprep.subr.mxu0 0.0
    %687 = vmatpush1.msra.mxu0 0.0
    %688 = vmatprep.subr.mxu0 0.0
    %689 = vmatpush1.msra.mxu0 0.0
    %690 = vmatprep.subr.mxu0 0.0
    %691 = vmatpush1.msra.mxu0 0.0
    %692 = vmatprep.subr.mxu0 0.0
    %693 = vmatpush1.msra.mxu0 0.0
    %694 = vmatprep.subr.mxu0 0.0
    %695 = vmatpush1.msra.mxu0 0.0
    %696 = vmatprep.subr.mxu0 0.0
    %697 = vmatpush1.msra.mxu0 0.0
    %698 = vmatprep.subr.mxu0 0.0
    %699 = vmatpush1.msra.mxu0 0.0
    %700 = vmatprep.subr.mxu0 0.0
    %701 = vmatpush1.msra.mxu0 0.0
    %702 = vmatprep.subr.mxu0 0.0
    %703 = vmatpush1.msra.mxu0 0.0
    %704 = vmatprep.subr.mxu0 0.0
    %705 = vmatpush1.msra.mxu0 0.0
    %706 = vmatprep.subr.mxu0 0.0
    %707 = vmatpush1.msra.mxu0 0.0
    %708 = vmatprep.subr.mxu0 0.0
    %709 = vmatpush1.msra.mxu0 0.0
    %710 = vmatprep.subr.mxu0 0.0
    %711 = vmatpush1.msra.mxu0 0.0
    %712 = vmatprep.subr.mxu0 0.0
    %713 = vmatpush1.msra.mxu0 0.0
    %714 = vmatprep.subr.mxu0 0.0
    %715 = vmatpush1.msra.mxu0 0.0
    %716 = vmatprep.subr.mxu0 0.0
    %717 = vmatpush1.msra.mxu0 0.0
    %718 = vmatprep.subr.mxu0 0.0
    %719 = vmatpush1.msra.mxu0 0.0
    %720 = vmatprep.subr.mxu0 0.0
    %721 = vmatpush1.msra.mxu0 0.0
    %722 = vmatprep.subr.mxu0 0.0
    %723 = vmatpush1.msra.mxu0 0.0
    %724 = vmatprep.subr.mxu0 0.0
    %725 = vmatpush1.msra.mxu0 0.0
    %726 = vmatprep.subr.mxu0 0.0
    %727 = vmatpush1.msra.mxu0 0.0
    %728 = vmatprep.subr.mxu0 0.0
    %729 = vmatpush1.msra.mxu0 0.0
    %730 = vmatprep.subr.mxu0 0.0
    %731 = vmatpush1.msra.mxu0 0.0
    %732 = vmatprep.subr.mxu0 0.0
    %733 = vmatpush1.msra.mxu0 0.0
    %734 = vmatprep.subr.mxu0 0.0
    %735 = vmatpush1.msra.mxu0 0.0
    %736 = vmatprep.subr.mxu0 0.0
    %737 = vmatpush1.msra.mxu0 0.0
    %738 = vmatprep.subr.mxu0 0.0
    %739 = vmatpush1.msra.mxu0 0.0
    %740 = vmatprep.subr.mxu0 0.0
    %741 = vmatpush1.msra.mxu0 0.0
    %742 = vmatprep.mubr.f32.mxu0 0.0
    %743 = vmatmul.mubr.f32.gmra.mrb[0].mxu0 %v261
    %v744 = vpop.f32.mrb[0].mxu0
    %v745 = vadd.f32 0.0, %v744
    %v746 = vpop.f32.mrb[0].mxu0
    %747 = vdwg.mxu0
    %v749 = vsel %vm259, %v669, 0
    %751 = vmatprep.subr.mxu0 0.0
    %752 = vmatpush1.msra.mxu0 %v670
    %753 = vmatprep.subr.mxu0 0.0
    %754 = vmatpush1.msra.mxu0 %v671
    %755 = vmatprep.subr.mxu0 0.0
    %756 = vmatpush1.msra.mxu0 %v672
    %757 = vmatprep.subr.mxu0 0.0
    %758 = vmatpush1.msra.mxu0 %v673
    %759 = vmatprep.subr.mxu0 0.0
    %760 = vmatpush1.msra.mxu0 0.0
    %761 = vmatprep.subr.mxu0 0.0
    %762 = vmatpush1.msra.mxu0 0.0
    %763 = vmatprep.subr.mxu0 0.0
    %764 = vmatpush1.msra.mxu0 0.0
    %765 = vmatprep.subr.mxu0 0.0
    %766 = vmatpush1.msra.mxu0 0.0
    %767 = vmatprep.subr.mxu0 0.0
    %768 = vmatpush1.msra.mxu0 0.0
    %769 = vmatprep.subr.mxu0 0.0
    %770 = vmatpush1.msra.mxu0 0.0
    %771 = vmatprep.subr.mxu0 0.0
    %772 = vmatpush1.msra.mxu0 0.0
    %773 = vmatprep.subr.mxu0 0.0
    %774 = vmatpush1.msra.mxu0 0.0
    %775 = vmatprep.subr.mxu0 0.0
    %776 = vmatpush1.msra.mxu0 0.0
    %777 = vmatprep.subr.mxu0 0.0
    %778 = vmatpush1.msra.mxu0 0.0
    %779 = vmatprep.subr.mxu0 0.0
    %780 = vmatpush1.msra.mxu0 0.0
    %781 = vmatprep.subr.mxu0 0.0
    %782 = vmatpush1.msra.mxu0 0.0
    %783 = vmatprep.subr.mxu0 0.0
    %784 = vmatpush1.msra.mxu0 0.0
    %785 = vmatprep.subr.mxu0 0.0
    %786 = vmatpush1.msra.mxu0 0.0
    %787 = vmatprep.subr.mxu0 0.0
    %788 = vmatpush1.msra.mxu0 0.0
    %789 = vmatprep.subr.mxu0 0.0
    %790 = vmatpush1.msra.mxu0 0.0
    %791 = vmatprep.subr.mxu0 0.0
    %792 = vmatpush1.msra.mxu0 0.0
    %793 = vmatprep.subr.mxu0 0.0
    %794 = vmatpush1.msra.mxu0 0.0
    %795 = vmatprep.subr.mxu0 0.0
    %796 = vmatpush1.msra.mxu0 0.0
    %797 = vmatprep.subr.mxu0 0.0
    %798 = vmatpush1.msra.mxu0 0.0
    %799 = vmatprep.subr.mxu0 0.0
    %800 = vmatpush1.msra.mxu0 0.0
    %801 = vmatprep.subr.mxu0 0.0
    %802 = vmatpush1.msra.mxu0 0.0
    %803 = vmatprep.subr.mxu0 0.0
    %804 = vmatpush1.msra.mxu0 0.0
    %805 = vmatprep.subr.mxu0 0.0
    %806 = vmatpush1.msra.mxu0 0.0
    %807 = vmatprep.subr.mxu0 0.0
    %808 = vmatpush1.msra.mxu0 0.0
    %809 = vmatprep.subr.mxu0 0.0
    %810 = vmatpush1.msra.mxu0 0.0
    %811 = vmatprep.subr.mxu0 0.0
    %812 = vmatpush1.msra.mxu0 0.0
    %813 = vmatprep.subr.mxu0 0.0
    %814 = vmatpush1.msra.mxu0 0.0
    %815 = vmatprep.mubr.f32.mxu0 0.0
    %816 = vmatmul.mubr.f32.gmra.mrb[0].mxu0 %v749
    %v817 = vpop.f32.mrb[0].mxu0
    %v818 = vadd.f32 %v745, %v817
    %v819 = vpop.f32.mrb[0].mxu0
    %820 = vdwg.mxu0
    %v821 = vld [vmem:[%s14] sm:$0x1]
    %v823 = vlaneseq
    %v824 = vshrl.u32 %v823, 7
    %v825 = vsub.s32 0, %v824
    %v826 = vrot.slane %v821, %v825
    %v828 = vadd.f32 %v818, %v826
    %v829 = vxor.u32 %v828, 2147483648
    %v830 = vmul.f32 %v829, 1.442695
    %v831 = vpow.pop %v830
    %v832 = vadd.f32 %v831, 1.0
    %v833 = vrcp.pop %v832
    %v834 = vmul.f32 1.0, %v833
    %v835 = vtanh.pop %v828
    %837 = vrot.lane.b32.xlu0 %v169, 32
    %v838 = vpop.permute.xlu0 %837
    %v840 = vmul.f32 %v834, %v838
    %842 = vrot.lane.b32.xlu0 %v835, 64
    %v843 = vpop.permute.xlu0 %842
    %v845 = vmul.f32 %v834, %v843
    %847 = vrot.lane.b32.xlu0 %v845, 32
    %v848 = vpop.permute.xlu0 %847
    %v850 = vadd.f32 %v840, %v848
    %v851 = vtanh.pop %v850
    %853 = vrot.lane.b32.xlu0 %v851, 64
    %v854 = vpop.permute.xlu0 %853
    %v856 = vmul.f32 %v834, %v854
    %858 = vrot.lane.b32.xlu0 %v856, 32
    %v859 = vpop.permute.xlu0 %858
    %861 = vst.msk [vmem:[#allocation17] sm:$0x3] %vm422, %v859
    %vm862 = vcmask 517376
    %863 = vst.msk [vmem:[#allocation17] sm:$0x3] %vm862, %v850
    // Predicated region
    $region98: #{tpu_custom_call.1} parent=1 // pred_check
      _
    $region99: #{tpu_custom_call.1} parent=1 // pred_check_branch
      %865 = sbr.rel (0) target = $region101
    $region100: #{tpu_custom_call.1} parent=1 // pred_region
      %s867 = ssub.s32 32, 32
      %868 = vsyncadd [#allocation4], %s867
      %s870 = sshll.u32 [#allocation17], 4
      %s871 = int_to_ptr.vmem [resolvable:$true] %s870
      %873 = dma.vmem_to_hbm [thread:$0]  %s871, 32, %s15, [#allocation4]
    $region101: #{tpu_custom_call.1} parent=1 // pred_fallthru
      _
    // Predicated region
    $region102: #{tpu_custom_call.1} parent=1 // pred_check
      _
    $region103: #{tpu_custom_call.1} parent=1 // pred_check_branch
      %875 = sbr.rel (0) target = $region105
    $region104: #{tpu_custom_call.1} parent=1 // pred_region
      %876 = dma.done [#allocation4], 32
    $region105: #{tpu_custom_call.1} parent=1 // pred_fallthru
      _
    %877 = vsyncpa [#allocation3], 1
    %878 = vsyncpa [#allocation6], 1
    %879 = vsyncpa [#allocation9], 1
    %880 = vsyncpa [#allocation12], 1
    %881 = vsyncpa [#allocation15], 1
    %882 = vsyncpa [#allocation4], 1

</llo_original>
